<compile_context>
chip_gen: v5e
topology: v5e:2x2
jax: 0.10.0
libtpu: 0.0.40
codegen_flags: <defaults>
</compile_context>

<pallas_src>
import jax
import jax.numpy as jnp
from jax.experimental import pallas as pl
from jax.experimental.pallas import tpu as pltpu

_MAX_LANE = 8192                       # widest lane-dense slab we consider
_TARGET_BLOCK_BYTES = 4 * 1024 * 1024  # ~4 MiB per block (per perf review)


def _mul_add_square_kernel(x_ref, o_ref):
    # ((x * 2) + 1) ** 2, computed natively in the I/O dtype.
    x = x_ref[...]
    y = x * 2 + 1
    o_ref[...] = y * y


def _elementwise_ref(v):
    """Plain-jnp version for tiny (<128 element) tails."""
    t = v * 2 + 1
    return t * t


def _sublane_for(dtype):
    itemsize = jnp.dtype(dtype).itemsize
    return {1: 32, 2: 16, 4: 8}.get(itemsize, 8)


def _run_2d(x2):
    """Run the elementwise kernel over a 2-D (rows, C) array."""
    R, C = x2.shape
    dtype = x2.dtype
    itemsize = jnp.dtype(dtype).itemsize
    sublane = _sublane_for(dtype)

    row_bytes = C * itemsize
    total_bytes = R * row_bytes

    # ~4 MiB blocks (HBM-streaming kernel: larger blocks amortize the
    # ~0.35 us per-grid-step overhead).
    tile_r = max(sublane, _TARGET_BLOCK_BYTES // max(1, row_bytes))

    # Guarantee >= 2 grid steps for arrays > ~1 MiB so the "parallel" axis
    # can shard across both v7x TensorCores.
    if total_bytes > (1 << 20):
        tile_r = min(tile_r, pl.cdiv(R, 2))

    # Round to the dtype's native sublane packing (keeps stores unmasked).
    tile_r = (tile_r // sublane) * sublane
    if tile_r <= 0:
        tile_r = min(R, sublane)
    if tile_r >= R:
        tile_r = R  # full second-to-last dim is always legal (no ragged block)

    grid_r = pl.cdiv(R, tile_r)  # boundary block (if any) handled by Pallas

    # Explicitly cover 2x double-buffered (in + out) blocks, with headroom.
    block_bytes = tile_r * C * itemsize
    vmem_bytes = int(min(32 * (1 << 20),
                         max(16 * (1 << 20), 4 * block_bytes + (2 << 20))))

    return pl.pallas_call(
        _mul_add_square_kernel,
        out_shape=jax.ShapeDtypeStruct((R, C), dtype),
        grid=(grid_r,),
        in_specs=[pl.BlockSpec((tile_r, C), lambda i: (i, 0))],
        out_specs=pl.BlockSpec((tile_r, C), lambda i: (i, 0)),
        compiler_params=pltpu.CompilerParams(
            dimension_semantics=("parallel",),
            vmem_limit_bytes=vmem_bytes),
    )(x2)


def _largest_lane_divisor(n):
    """Largest multiple-of-128 divisor of n that is <= _MAX_LANE (or None)."""
    cmax = min(_MAX_LANE, (n // 128) * 128)
    for c in range(cmax, 127, -128):
        if n % c == 0:
            return c
    return None


def pt_module_forward(x):
    """((x * 2) + 1) ** 2 elementwise, preserving shape and dtype."""
    orig_shape = x.shape
    flat = x.reshape(-1)
    n = flat.shape[0]

    if n == 0:
        return x

    # Fast path: element count divisible by 128 -> free reshape to a
    # lane-dense slab, 1 read + 1 write of HBM.
    lane = _largest_lane_divisor(n)
    if lane is not None:
        out2 = _run_2d(flat.reshape(n // lane, lane))
        return out2.reshape(orig_shape)

    # Non-128-divisible element count: run the largest 128-aligned prefix
    # through the kernel; handle the <128-element tail with plain jnp.
    n_main = (n // 128) * 128
    if n_main == 0:
        # Fewer than 128 elements total -> not worth a kernel launch.
        return _elementwise_ref(flat).reshape(orig_shape)

    head = flat[:n_main]
    tail = flat[n_main:]
    lane = _largest_lane_divisor(n_main)
    head_out = _run_2d(head.reshape(n_main // lane, lane)).reshape(-1)
    tail_out = _elementwise_ref(tail)
    return jnp.concatenate([head_out, tail_out]).reshape(orig_shape)


if __name__ == "__main__":
    key = jax.random.PRNGKey(0)

    # Shape consistent with the module's 2-D loop over dims 0 and 1.
    x = jax.random.normal(key, (2, 4, 16, 16), dtype=jnp.float32)
    y = pt_module_forward(x)
    jax.block_until_ready(y)
    ref = jnp.square(x * 2.0 + 1.0)
    assert y.shape == x.shape and y.dtype == x.dtype
    assert jnp.allclose(y, ref, atol=1e-6, rtol=1e-6)

    # Non-128-divisible element count: exercises the prefix + jnp-tail path.
    x2 = jax.random.normal(jax.random.PRNGKey(1), (16, 100), dtype=jnp.float32)
    y2 = pt_module_forward(x2)
    jax.block_until_ready(y2)
    ref2 = jnp.square(x2 * 2.0 + 1.0)
    assert y2.shape == x2.shape and y2.dtype == x2.dtype
    assert jnp.allclose(y2, ref2, atol=1e-6, rtol=1e-6)

    # bf16 input: native bf16 compute, 16-row sublane granularity.
    x3 = jax.random.normal(jax.random.PRNGKey(2), (4, 8, 128),
                           dtype=jnp.bfloat16)
    y3 = pt_module_forward(x3)
    jax.block_until_ready(y3)
    ref3 = jnp.square(x3 * 2 + 1)
    assert y3.shape == x3.shape and y3.dtype == x3.dtype
    assert jnp.allclose(y3.astype(jnp.float32), ref3.astype(jnp.float32),
                        atol=1e-1, rtol=2e-2)

    print("KERNEL_OK")
</pallas_src>

<mosaic_0001>
module attributes {stable_mosaic.version = 11 : i64} {
  func.func @_mul_add_square_kernel(%arg0: i32, %arg1: memref<1x2048xf32, #tpu.memory_space<vmem>>, %arg2: memref<1x2048xf32, #tpu.memory_space<vmem>>) attributes {dimension_semantics = [#tpu.dimension_semantics<parallel>], iteration_bounds = array<i64: 1>, scalar_prefetch = 0 : i64, scratch_operands = 0 : i64, tpu.core_type = #tpu.core_type<tc>, window_params = [{transform_indices = @transform_0, window_bounds = array<i64: 1, 2048>}, {transform_indices = @transform_1, window_bounds = array<i64: 1, 2048>}]} {
    %c0 = arith.constant 0 : index
    %c0_0 = arith.constant 0 : index
    %0 = vector.load %arg1[%c0, %c0_0] : memref<1x2048xf32, #tpu.memory_space<vmem>>, vector<1x2048xf32>
    %cst = arith.constant 2.000000e+00 : f32
    %1 = vector.broadcast %cst : f32 to vector<1x2048xf32>
    %2 = arith.mulf %0, %1 : vector<1x2048xf32>
    %cst_1 = arith.constant 1.000000e+00 : f32
    %3 = vector.broadcast %cst_1 : f32 to vector<1x2048xf32>
    %4 = arith.addf %2, %3 : vector<1x2048xf32>
    %5 = arith.mulf %4, %4 : vector<1x2048xf32>
    %c0_2 = arith.constant 0 : index
    %c0_3 = arith.constant 0 : index
    %6 = vector.load %arg2[%c0_2, %c0_3] : memref<1x2048xf32, #tpu.memory_space<vmem>>, vector<1x2048xf32>
    tpu.vector_store %arg2[%c0_2, %c0_3], %5 {strides = array<i32>} : memref<1x2048xf32, #tpu.memory_space<vmem>>, vector<1x2048xf32>,
    return
  }
  func.func @transform_0(%arg0: i32) -> (i32, i32) {
    %c0_i32 = arith.constant 0 : i32
    %c0_i32_0 = arith.constant 0 : i32
    return %arg0, %c0_i32 : i32, i32
  }
  func.func @transform_1(%arg0: i32) -> (i32, i32) {
    %c0_i32 = arith.constant 0 : i32
    %c0_i32_0 = arith.constant 0 : i32
    return %arg0, %c0_i32 : i32, i32
  }
}

</mosaic_0001>

<llo_original>
// kernel: tpu_custom_call.1
$region0: #{tpu_custom_call.1}
  #allocation0 [shape = 'u32[]', space=smem, size = 0x4, offset = 0x4, fixed_abs, tag = 'smem constant byte address 0x4 - core index']
  #allocation1 [shape = 'u32[72,128]{1,0:T(1,128)}', space=vmem, size = 0x9000, scoped, tag = 'internal scratch']
  %s0 = inlined_call_operand.hbm [shape: f32[1,2048], index: 0, kind: input, shape index: {}]
  %s1 = inlined_call_operand.hbm [shape: f32[1,2048], index: 1, kind: output, shape index: {}]
  %s2 = sld [smem:[#allocation0]]
  $region18: #{tpu_custom_call.1} parent=0
    _
  %s4 = ssub.s32 1, %s2
  %s5 = scalar_select 0, %s4, %s2
  $region1: #{tpu_custom_call.1} parent=0
    #allocation2 [shape = 'u8[8192]{0}', space=vmem, size = 0x2000, scoped, tag = 'input window, operand 0, single buffered']
    #allocation3 [shape = 's32[1]{0}', space=sflag, size = 0x4, scoped, tag = 'scoped memory for tpu_custom_call.1']
    #allocation4 [shape = 's32[1]{0}', space=sflag, size = 0x4, scoped, tag = 'scoped memory for tpu_custom_call.1']
    #allocation5 [shape = 'u8[8192]{0}', space=vmem, size = 0x2000, scoped, tag = 'output window, operand 0, single buffered']
    %6 = vsyncpa [#allocation3], 0
    %7 = vsyncpa [#allocation4], 0
    // Predicated region
    $region2: #{tpu_custom_call.1} parent=1 // pred_check
      _
    $region3: #{tpu_custom_call.1} parent=1 // pred_check_branch
      %9 = sbr.rel (0) target = $region5
    $region4: #{tpu_custom_call.1} parent=1 // pred_region
      %11 = vsyncadd [#allocation3], 0
      %s13 = sshll.u32 %s0, 4
      %s14 = int_to_ptr.hbm [resolvable:$true] %s13
      %s15 = sshll.u32 [#allocation2], 4
      %s16 = int_to_ptr.vmem [resolvable:$true] %s15
      %18 = dma.hbm_to_vmem [thread:$0]  %s14, 256, %s16, [#allocation3]
    $region5: #{tpu_custom_call.1} parent=1 // pred_fallthru
      _
    // Predicated region
    $region6: #{tpu_custom_call.1} parent=1 // pred_check
      _
    $region7: #{tpu_custom_call.1} parent=1 // pred_check_branch
      %20 = sbr.rel (0) target = $region9
    $region8: #{tpu_custom_call.1} parent=1 // pred_region
      %22 = dma.done [#allocation3], 256
    $region9: #{tpu_custom_call.1} parent=1 // pred_fallthru
      _
    %v23 = vld [vmem:[#allocation2] sm:$0xff]
    %v24 = vld [vmem:[#allocation2 + $0x8] sm:$0xff]
    %v25 = vmul.f32 %v23, 2.0
    %v26 = vmul.f32 %v24, 2.0
    %v27 = vadd.f32 %v25, 1.0
    %v28 = vadd.f32 %v26, 1.0
    %v29 = vmul.f32 %v27, %v27
    %v30 = vmul.f32 %v28, %v28
    %31 = vst [vmem:[#allocation5] sm:$0xff] %v29
    %32 = vst [vmem:[#allocation5 + $0x8] sm:$0xff] %v30
    // Predicated region
    $region10: #{tpu_custom_call.1} parent=1 // pred_check
      _
    $region11: #{tpu_custom_call.1} parent=1 // pred_check_branch
      %34 = sbr.rel (0) target = $region13
    $region12: #{tpu_custom_call.1} parent=1 // pred_region
      %36 = vsyncadd [#allocation4], 0
      %s38 = sshll.u32 [#allocation5], 4
      %s39 = int_to_ptr.vmem [resolvable:$true] %s38
      %s40 = sshll.u32 %s1, 4
      %s41 = int_to_ptr.hbm [resolvable:$true] %s40
      %43 = dma.vmem_to_hbm [thread:$0]  %s39, 256, %s41, [#allocation4]
    $region13: #{tpu_custom_call.1} parent=1 // pred_fallthru
      _
    // Predicated region
    $region14: #{tpu_custom_call.1} parent=1 // pred_check
      _
    $region15: #{tpu_custom_call.1} parent=1 // pred_check_branch
      %45 = sbr.rel (0) target = $region17
    $region16: #{tpu_custom_call.1} parent=1 // pred_region
      %47 = dma.done [#allocation4], 256
    $region17: #{tpu_custom_call.1} parent=1 // pred_fallthru
      _
    %48 = vsyncpa [#allocation3], 1
    %49 = vsyncpa [#allocation4], 1

</llo_original>
